<compile_context>
chip_gen: v5e
topology: v5e:2x2
jax: 0.10.0
libtpu: 0.0.40
codegen_flags: <defaults>
</compile_context>

<pallas_src>
import math
import functools

import jax
import jax.numpy as jnp
from jax import lax
from jax.experimental import pallas as pl
from jax.experimental.pallas import tpu as pltpu


def _round_up(x, m):
    return ((x + m - 1) // m) * m


def _vmem_limit_bytes():
    """Per-generation scoped-VMEM budget (review: re-budget for v7x's 64 MiB)."""
    try:
        cap = int(pltpu.get_tpu_info().vmem_capacity_bytes)
    except Exception:
        return 32 * 1024 * 1024
    return int(min(max(cap - 32 * 1024 * 1024, cap // 2), 100 * 1024 * 1024))


def probe_roll_sign():
    """Sign s.t. pltpu.roll(z, (sign*s) % n, axis=1)[p] == z[(p + s) % n].

    pltpu.roll follows jnp.roll semantics on current JAX; probing once at setup
    keeps the conv tap shifts correct even if that convention ever changes."""
    def k(x_ref, o_ref):
        o_ref[...] = pltpu.roll(x_ref[...], 1, axis=1)

    x = jnp.arange(8 * 128, dtype=jnp.float32).reshape(8, 128)
    y = pl.pallas_call(k, out_shape=jax.ShapeDtypeStruct((8, 128), jnp.float32))(x)
    return -1 if bool(jnp.array_equal(y, jnp.roll(x, 1, axis=1))) else 1


# ----------------------------------------------------------------------------
# The fused REEDGE kernel (one grid step == one batch element, whole image in
# VMEM; zero padding of the 3x3 convs is done with lane masks).
# ----------------------------------------------------------------------------
def _reedge_kernel(x_ref, dec_ref, aw_ref, ab_ref, w1_ref, b1_ref, w2_ref,
                   b2_ref, g1a_ref, g1b_ref, g2_ref, o_ref, stk_ref,
                   *, C, Cp, H, W, rsgn):
    HW = H * W

    lane = lax.broadcasted_iota(jnp.int32, (1, HW), 1)
    col = lane % W
    row = lane // W
    col_has_left = col >= 1          # source column c-1 exists
    col_has_right = col <= W - 2     # source column c+1 exists
    row_has_up = row >= 1            # source row r-1 exists
    row_has_down = row <= H - 2      # source row r+1 exists

    # Zero once so the (Cp - C) padding rows of every tap slot (they multiply
    # zero weight columns) can never inject NaNs into the MXU accumulation.
    if Cp != C:
        stk_ref[...] = jnp.zeros_like(stk_ref)

    def shift_lanes(z, s):
        # result[p] = z[(p + s) % HW]
        if s == 0:
            return z
        return pltpu.roll(z, (rsgn * s) % HW, axis=1)

    def conv3x3(z, w, b):
        # z: (C, HW) bf16, row-major lanes.  Build the 9 taps into the shared
        # (9*Cp, HW) scratch (dx-group first: one column mask per dx, shared
        # across the 3 dy shifts; row masks give the top/bottom zero padding),
        # then contract with ONE bf16 MXU matmul.  Returns (C, HW) f32.
        for dx in (-1, 0, 1):
            zc = shift_lanes(z, dx)
            if dx == -1:
                zc = jnp.where(col_has_left, zc, jnp.zeros_like(zc))
            elif dx == 1:
                zc = jnp.where(col_has_right, zc, jnp.zeros_like(zc))
            for dy in (-1, 0, 1):
                zz = shift_lanes(zc, dy * W)
                if dy == -1:
                    zz = jnp.where(row_has_up, zz, jnp.zeros_like(zz))
                elif dy == 1:
                    zz = jnp.where(row_has_down, zz, jnp.zeros_like(zz))
                k = (dy + 1) * 3 + (dx + 1)          # == ky*3 + kx
                stk_ref[pl.ds(k * Cp, C), :] = zz
        acc = jnp.dot(w, stk_ref[...], preferred_element_type=jnp.float32)
        return acc + b

    def f_block(z_f32, i):
        z = z_f32.astype(jnp.bfloat16)
        h = conv3x3(z, w1_ref[i], b1_ref[i])
        h = jnp.maximum(h, 0.0).astype(jnp.bfloat16)
        return conv3x3(h, w2_ref[i], b2_ref[i])

    def get_alpha(avg_a, avg_b, max_a, max_b, i):
        # getAlpha: sigmoid(fc2(relu(fc1(avg))) + fc2(relu(fc1(max)))) where
        # fc1 contracts the concatenated (2C) channel vector.
        w1a = g1a_ref[i]                 # (C, C) = fc1[:, :C].T
        w1b = g1b_ref[i]                 # (C, C) = fc1[:, C:].T
        w2 = g2_ref[i]                   # (1, C)

        def head(pa, pb):                # pa/pb: (C, 1) pooled channel vectors
            h = (jnp.sum(w1a * pa, axis=0, keepdims=True)
                 + jnp.sum(w1b * pb, axis=0, keepdims=True))     # (1, C)
            h = jnp.maximum(h, 0.0)
            return jnp.sum(h * w2, axis=1, keepdims=True)        # (1, 1)

        logit = head(avg_a, avg_b) + head(max_a, max_b)
        return 1.0 / (1.0 + jnp.exp(-logit))                     # (1, 1) f32

    x = x_ref[0]                                                 # (C, HW) f32
    dec = dec_ref[0].astype(jnp.bfloat16)                        # (enf, HW)

    # alignchn: 1x1 conv == channel matmul + bias.
    d = jnp.dot(aw_ref[...], dec, preferred_element_type=jnp.float32) + ab_ref[...]

    f1 = f_block(x, 0)                                           # F1(x)
    f2 = f_block(x + d, 1)                                       # F2(x + d)

    inv_hw = 1.0 / HW
    avg1 = jnp.sum(f1, axis=1, keepdims=True) * inv_hw
    max1 = jnp.max(f1, axis=1, keepdims=True)
    avg2 = jnp.sum(f2, axis=1, keepdims=True) * inv_hw
    max2 = jnp.max(f2, axis=1, keepdims=True)
    a1 = get_alpha(avg1, avg2, max1, max2, 0)

    out1 = f1 * a1 + f2 * (1.0 - a1)
    f4 = f_block(d + out1, 2)                                    # F3(d + out1)

    avg4 = jnp.sum(f4, axis=1, keepdims=True) * inv_hw
    max4 = jnp.max(f4, axis=1, keepdims=True)
    a2 = get_alpha(avg1, avg4, max1, max4, 1)                    # f3 == f1: reuse pools

    # out = x + f3*a2 + f4*(1-a2)
    o_ref[0] = (x + f1 * a2 + f4 * (1.0 - a2)).astype(o_ref.dtype)


# ----------------------------------------------------------------------------
# Forward pass (wrapper JAX is just two transposes and a free reshape)
# ----------------------------------------------------------------------------
def reedge_forward(feature_map, decoder_map, KP, H, W, rsgn=-1):
    B, HW, C = feature_map.shape
    assert HW == H * W
    enf = decoder_map.shape[1]
    Cp = KP["Cp"]

    x = jnp.transpose(feature_map, (0, 2, 1))            # (B, C, HW) f32
    dec = decoder_map.reshape(B, enf, HW)                # (B, enf, HW) f32 (free)

    kern = functools.partial(_reedge_kernel, C=C, Cp=Cp, H=H, W=W, rsgn=rsgn)
    rep2 = lambda b: (0, 0)        # resident 2-D operands (constant index map)
    rep3 = lambda b: (0, 0, 0)     # resident 3-D operands

    out = pl.pallas_call(
        kern,
        out_shape=jax.ShapeDtypeStruct((B, C, HW), jnp.float32),
        grid=(B,),
        in_specs=[
            pl.BlockSpec((1, C, HW), lambda b: (b, 0, 0)),       # x
            pl.BlockSpec((1, enf, HW), lambda b: (b, 0, 0)),     # decoder map
            pl.BlockSpec((C, enf), rep2),                        # align weight (bf16)
            pl.BlockSpec((C, 1), rep2),                          # align bias (f32)
            pl.BlockSpec((3, C, 9 * Cp), rep3),                  # conv1 weights F1..F3
            pl.BlockSpec((3, C, 1), rep3),                       # conv1 biases
            pl.BlockSpec((3, C, 9 * Cp), rep3),                  # conv2 weights
            pl.BlockSpec((3, C, 1), rep3),                       # conv2 biases
            pl.BlockSpec((2, C, C), rep3),                       # getAlpha fc1 (first half)
            pl.BlockSpec((2, C, C), rep3),                       # getAlpha fc1 (second half)
            pl.BlockSpec((2, 1, C), rep3),                       # getAlpha fc2
        ],
        out_specs=pl.BlockSpec((1, C, HW), lambda b: (b, 0, 0)),
        scratch_shapes=[pltpu.VMEM((9 * Cp, HW), jnp.bfloat16)],  # stacked conv taps
        compiler_params=pltpu.CompilerParams(
            dimension_semantics=("parallel",),
            vmem_limit_bytes=_vmem_limit_bytes()),
    )(x, dec, KP["align_w"], KP["align_b"], KP["Wc1"], KP["Bc1"],
      KP["Wc2"], KP["Bc2"], KP["gaW1a"], KP["gaW1b"], KP["gaW2"])

    return jnp.transpose(out, (0, 2, 1))                         # (B, HW, C) f32


# ----------------------------------------------------------------------------
# Deterministic parameter init (PyTorch layouts) + kernel-layout conversion
# ----------------------------------------------------------------------------
def init_params(key, C, enf):
    ks = jax.random.split(key, 18)
    p, i = {}, 0
    for name in ("F1", "F2", "F3"):
        p[name] = dict(
            w1=0.1 * jax.random.normal(ks[i], (C, C, 3, 3), jnp.float32),
            b1=0.1 * jax.random.normal(ks[i + 1], (C,), jnp.float32),
            w2=0.1 * jax.random.normal(ks[i + 2], (C, C, 3, 3), jnp.float32),
            b2=0.1 * jax.random.normal(ks[i + 3], (C,), jnp.float32),
        )
        i += 4
    p["ga1_w1"] = 0.1 * jax.random.normal(ks[i], (C, 2 * C), jnp.float32); i += 1
    p["ga1_w2"] = 0.1 * jax.random.normal(ks[i], (1, C), jnp.float32); i += 1
    p["ga2_w1"] = 0.1 * jax.random.normal(ks[i], (C, 2 * C), jnp.float32); i += 1
    p["ga2_w2"] = 0.1 * jax.random.normal(ks[i], (1, C), jnp.float32); i += 1
    p["align_w"] = 0.1 * jax.random.normal(ks[i], (C, enf), jnp.float32); i += 1
    p["align_b"] = 0.1 * jax.random.normal(ks[i], (C,), jnp.float32); i += 1
    return p


def to_kernel_params(p, C):
    # Cp: channels rounded up to the bf16 sublane tile (16) so every tap slot
    # of the in-kernel stacked operand starts on a tile boundary.
    Cp = _round_up(C, 16)

    def conv_w(w4):   # (O, I, 3, 3) -> (O, 9*Cp) bf16, column block k = ky*3+kx
        O, I = w4.shape[0], w4.shape[1]
        w = jnp.transpose(w4, (0, 2, 3, 1)).reshape(O, 9, I)     # [o, k, i]
        if Cp > I:
            w = jnp.pad(w, ((0, 0), (0, 0), (0, Cp - I)))
        return w.reshape(O, 9 * Cp).astype(jnp.bfloat16)

    K = {"Cp": Cp}
    names = ("F1", "F2", "F3")
    K["Wc1"] = jnp.stack([conv_w(p[n]["w1"]) for n in names])            # (3, C, 9Cp) bf16
    K["Bc1"] = jnp.stack([p[n]["b1"].reshape(C, 1) for n in names])      # (3, C, 1)  f32
    K["Wc2"] = jnp.stack([conv_w(p[n]["w2"]) for n in names])
    K["Bc2"] = jnp.stack([p[n]["b2"].reshape(C, 1) for n in names])
    K["gaW1a"] = jnp.stack([p["ga1_w1"][:, :C].T, p["ga2_w1"][:, :C].T])  # (2, C, C) f32
    K["gaW1b"] = jnp.stack([p["ga1_w1"][:, C:].T, p["ga2_w1"][:, C:].T])  # (2, C, C) f32
    K["gaW2"] = jnp.stack([p["ga1_w2"], p["ga2_w2"]])                     # (2, 1, C) f32
    K["align_w"] = p["align_w"].astype(jnp.bfloat16)                      # (C, enf) bf16
    K["align_b"] = p["align_b"].reshape(C, 1)                             # (C, 1)   f32
    return K


# ----------------------------------------------------------------------------
# Pure-JAX reference (mirrors the PyTorch module) for correctness checking
# ----------------------------------------------------------------------------
def ref_forward(feature_map, decoder_map, p):
    B, HW, C = feature_map.shape
    H = W = int(math.isqrt(HW))
    x = jnp.transpose(feature_map, (0, 2, 1)).reshape(B, C, H, W)
    dn = ("NCHW", "OIHW", "NCHW")
    prec = jax.lax.Precision.HIGHEST

    def conv(inp, w, b, pad):
        out = jax.lax.conv_general_dilated(inp, w, (1, 1), pad,
                                           dimension_numbers=dn, precision=prec)
        return out + b.reshape(1, -1, 1, 1)

    def fblk(inp, q):
        h = jax.nn.relu(conv(inp, q["w1"], q["b1"], ((1, 1), (1, 1))))
        return conv(h, q["w2"], q["b2"], ((1, 1), (1, 1)))

    def get_alpha(xcat, w1, w2):
        avg = jnp.mean(xcat, axis=(2, 3), keepdims=True)
        mx = jnp.max(xcat, axis=(2, 3), keepdims=True)

        def mlp(v):
            h = jax.nn.relu(jnp.einsum("oi,bihw->bohw", w1, v, precision=prec))
            return jnp.einsum("oi,bihw->bohw", w2, h, precision=prec)

        return jax.nn.sigmoid(mlp(avg) + mlp(mx))

    d = conv(decoder_map, p["align_w"].reshape(C, -1, 1, 1), p["align_b"],
             ((0, 0), (0, 0)))
    f1 = fblk(x, p["F1"])
    f2 = fblk(x + d, p["F2"])
    a1 = get_alpha(jnp.concatenate([f1, f2], axis=1), p["ga1_w1"], p["ga1_w2"])
    out1 = f1 * a1 + f2 * (1.0 - a1)
    f3 = f1
    f4 = fblk(d + out1, p["F3"])
    a2 = get_alpha(jnp.concatenate([f3, f4], axis=1), p["ga2_w1"], p["ga2_w2"])
    out = x + f3 * a2 + f4 * (1.0 - a2)
    return jnp.transpose(out.reshape(B, C, HW), (0, 2, 1))


if __name__ == "__main__":
    B, C, H, W, enf = 2, 4, 16, 16, 8
    HW = H * W

    key = jax.random.PRNGKey(0)
    kp, kf, kd = jax.random.split(key, 3)
    params = init_params(kp, C, enf)
    kparams = to_kernel_params(params, C)

    feature_map = jax.random.normal(kf, (B, HW, C), jnp.float32)      # (B, HW, C)
    decoder_map = jax.random.normal(kd, (B, enf, H, W), jnp.float32)  # NCHW

    rsgn = probe_roll_sign()
    fwd = jax.jit(functools.partial(reedge_forward, KP=kparams, H=H, W=W, rsgn=rsgn))
    out = jax.block_until_ready(fwd(feature_map, decoder_map))

    ref = ref_forward(feature_map, decoder_map, params)
    err = float(jnp.max(jnp.abs(out - ref)))
    assert out.shape == (B, HW, C), out.shape
    # bf16 MXU weights/activations vs the f32 HIGHEST-precision reference:
    # intentional precision trade, drift stays well below 5e-2 at these scales.
    assert err < 5e-2, f"max abs err {err}"
    print("KERNEL_OK")
</pallas_src>

<mosaic_0001>
module attributes {stable_mosaic.version = 11 : i64} {
  func.func @k(%arg0: memref<8x128xf32, #tpu.memory_space<vmem>>, %arg1: memref<8x128xf32, #tpu.memory_space<vmem>>) attributes {dimension_semantics = [], scalar_prefetch = 0 : i64, scratch_operands = 0 : i64, tpu.core_type = #tpu.core_type<tc>} {
    %c0 = arith.constant 0 : index
    %c0_0 = arith.constant 0 : index
    %0 = vector.load %arg0[%c0, %c0_0] : memref<8x128xf32, #tpu.memory_space<vmem>>, vector<8x128xf32>
    %c1_i32 = arith.constant 1 : i32
    %1 = tpu.dynamic_rotate %0 by %c1_i32 dim 1 : vector<8x128xf32>, i32 -> vector<8x128xf32>
    %c0_1 = arith.constant 0 : index
    %c0_2 = arith.constant 0 : index
    %2 = vector.load %arg1[%c0_1, %c0_2] : memref<8x128xf32, #tpu.memory_space<vmem>>, vector<8x128xf32>
    tpu.vector_store %arg1[%c0_1, %c0_2], %1 {strides = array<i32>} : memref<8x128xf32, #tpu.memory_space<vmem>>, vector<8x128xf32>,
    return
  }
}

</mosaic_0001>

<llo_original>
// kernel: tpu_custom_call.1
$region0: #{tpu_custom_call.1}
  #allocation0 [shape = 'u32[]', space=smem, size = 0x4, offset = 0x4, fixed_abs, tag = 'smem constant byte address 0x4 - core index']
  #allocation1 [shape = 'u32[72,128]{1,0:T(1,128)}', space=vmem, size = 0x9000, scoped, tag = 'internal scratch']
  %s0 = inlined_call_operand.hbm [shape: f32[8,128], index: 0, kind: input, shape index: {}]
  %s1 = inlined_call_operand.hbm [shape: f32[8,128], index: 1, kind: output, shape index: {}]
  %s2 = sld [smem:[#allocation0]]
  $region18: #{tpu_custom_call.1} parent=0
    _
  %s4 = ssub.s32 1, %s2
  %s5 = scalar_select 0, %s4, %s2
  $region1: #{tpu_custom_call.1} parent=0
    #allocation2 [shape = 'u8[4096]{0}', space=vmem, size = 0x1000, scoped, tag = 'input window, operand 0, single buffered']
    #allocation3 [shape = 's32[1]{0}', space=sflag, size = 0x4, scoped, tag = 'scoped memory for tpu_custom_call.1']
    #allocation4 [shape = 's32[1]{0}', space=sflag, size = 0x4, scoped, tag = 'scoped memory for tpu_custom_call.1']
    #allocation5 [shape = 'u8[4096]{0}', space=vmem, size = 0x1000, scoped, tag = 'output window, operand 0, single buffered']
    %6 = vsyncpa [#allocation3], 0
    %7 = vsyncpa [#allocation4], 0
    // Predicated region
    $region2: #{tpu_custom_call.1} parent=1 // pred_check
      _
    $region3: #{tpu_custom_call.1} parent=1 // pred_check_branch
      %9 = sbr.rel (0) target = $region5
    $region4: #{tpu_custom_call.1} parent=1 // pred_region
      %11 = vsyncadd [#allocation3], 0
      %s13 = sshll.u32 %s0, 4
      %s14 = int_to_ptr.hbm [resolvable:$true] %s13
      %s15 = sshll.u32 [#allocation2], 4
      %s16 = int_to_ptr.vmem [resolvable:$true] %s15
      %18 = dma.hbm_to_vmem [thread:$0]  %s14, 128, %s16, [#allocation3]
    $region5: #{tpu_custom_call.1} parent=1 // pred_fallthru
      _
    // Predicated region
    $region6: #{tpu_custom_call.1} parent=1 // pred_check
      _
    $region7: #{tpu_custom_call.1} parent=1 // pred_check_branch
      %20 = sbr.rel (0) target = $region9
    $region8: #{tpu_custom_call.1} parent=1 // pred_region
      %22 = dma.done [#allocation3], 128
    $region9: #{tpu_custom_call.1} parent=1 // pred_fallthru
      _
    %v23 = vld [vmem:[#allocation2] sm:$0xff]
    %24 = vrot.lane.b32.xlu0 %v23, 1
    %v25 = vpop.permute.xlu0 %24
    %26 = vst [vmem:[#allocation5] sm:$0xff] %v25
    // Predicated region
    $region10: #{tpu_custom_call.1} parent=1 // pred_check
      _
    $region11: #{tpu_custom_call.1} parent=1 // pred_check_branch
      %28 = sbr.rel (0) target = $region13
    $region12: #{tpu_custom_call.1} parent=1 // pred_region
      %30 = vsyncadd [#allocation4], 0
      %s32 = sshll.u32 [#allocation5], 4
      %s33 = int_to_ptr.vmem [resolvable:$true] %s32
      %s34 = sshll.u32 %s1, 4
      %s35 = int_to_ptr.hbm [resolvable:$true] %s34
      %37 = dma.vmem_to_hbm [thread:$0]  %s33, 128, %s35, [#allocation4]
    $region13: #{tpu_custom_call.1} parent=1 // pred_fallthru
      _
    // Predicated region
    $region14: #{tpu_custom_call.1} parent=1 // pred_check
      _
    $region15: #{tpu_custom_call.1} parent=1 // pred_check_branch
      %39 = sbr.rel (0) target = $region17
    $region16: #{tpu_custom_call.1} parent=1 // pred_region
      %41 = dma.done [#allocation4], 128
    $region17: #{tpu_custom_call.1} parent=1 // pred_fallthru
      _
    %42 = vsyncpa [#allocation3], 1
    %43 = vsyncpa [#allocation4], 1

</llo_original>
